<compile_context>
chip_gen: v7x
topology: tpu7x:2x2x1
jax: 0.10.0
libtpu: 0.0.40
codegen_flags: <defaults>
</compile_context>

<pallas_src>
import jax
import jax.numpy as jnp
import numpy as np
from jax.experimental import pallas as pl
from jax.experimental.pallas import tpu as pltpu

KSIZE = 5
PAD = 2
HIDDEN = 128


def _round_up(x, m):
    return ((x + m - 1) // m) * m


# ---------------- host-side (NumPy) weight folding ----------------

def _conv1_band(w1f, L):
    """w1f: (C, K) -> (L, C*L) band.  band[s, co*L + t] = w1f[co, s - t + PAD]."""
    C = w1f.shape[0]
    s = np.arange(L)[:, None]
    t = np.arange(L)[None, :]
    k = s - t + PAD
    valid = (k >= 0) & (k < KSIZE)
    kc = np.clip(k, 0, KSIZE - 1)
    band = np.zeros((L, C * L), np.float32)
    for co in range(C):
        band[:, co * L:(co + 1) * L] = np.where(valid, w1f[co][kc], 0.0)
    return band


def _conv2_band(w2, L2):
    """w2: (C, C, K) -> (C*L2, C*L2) band.
    band[ci*L2 + j, co*L2 + t] = w2[co, ci, j - t + PAD]."""
    C = w2.shape[0]
    j = np.arange(L2)[:, None]
    t = np.arange(L2)[None, :]
    k = j - t + PAD
    valid = (k >= 0) & (k < KSIZE)
    kc = np.clip(k, 0, KSIZE - 1)
    band = np.zeros((C * L2, C * L2), np.float32)
    for co in range(C):
        for ci in range(C):
            band[ci * L2:(ci + 1) * L2, co * L2:(co + 1) * L2] = \
                np.where(valid, w2[co, ci][kc], 0.0)
    return band


def _pool_select(C, Lin):
    """0/1 selection+compaction matrices for stride-2 max pooling on
    channel-major activations: pooled = max(h @ E, h @ O)."""
    Lout = Lin // 2
    rows = np.arange(C)[:, None] * Lin + 2 * np.arange(Lout)[None, :]
    cols = np.arange(C)[:, None] * Lout + np.arange(Lout)[None, :]
    E = np.zeros((C * Lin, C * Lout), np.float32)
    O = np.zeros((C * Lin, C * Lout), np.float32)
    E[rows.ravel(), cols.ravel()] = 1.0
    O[(rows + 1).ravel(), cols.ravel()] = 1.0
    return E, O


def _default_weights_dtype():
    """bf16 weights on bf16-native-MXU chips (v6e / v7x); f32 elsewhere (v5e)."""
    try:
        kind = jax.devices()[0].device_kind.lower()
    except Exception:
        return jnp.float32
    if any(tag in kind for tag in ("v6", "v7", "tpu7")):
        return jnp.bfloat16
    return jnp.float32


def fold_params(params, weights_dtype=None):
    """Fold PyTorch-layout CNN1D params into matmul-ready matrices (done ONCE)."""
    w1, b1, w2, b2, fc1_w, fc1_b, fc2_w, fc2_b = [
        np.asarray(p, np.float32) for p in params]
    C = w1.shape[0]
    H, D = fc1_w.shape
    O = fc2_w.shape[0]
    L4 = D // C
    L2, L = 2 * L4, 4 * L4
    assert C * L4 == D and w1.shape == (C, 1, KSIZE) and w2.shape == (C, C, KSIZE)

    if weights_dtype is None:
        weights_dtype = _default_weights_dtype()

    # conv-as-matmul band matrices + pool selection matrices
    w1band = _conv1_band(w1[:, 0, :], L)            # (L, C*L)
    w2band = _conv2_band(w2, L2)                    # (C*L2, C*L2)
    e1, o1 = _pool_select(C, L)                     # (C*L,  C*L2)
    e2, o2 = _pool_select(C, L2)                    # (C*L2, D)

    # fold the stride-2 max-pool column selections into the conv bands
    W1e, W1o = w1band @ e1, w1band @ o1             # (L,    C*L2)
    W2e, W2o = w2band @ e2, w2band @ o2             # (C*L2, D)

    fw1 = np.ascontiguousarray(fc1_w.T)             # (D, H)
    Opad = _round_up(O, 128)                        # lane-dense output width
    fw2 = np.zeros((H, Opad), np.float32)
    fw2[:, :O] = fc2_w.T

    # pack all biases into one resident (8, BW) f32 array
    CL2 = C * L2
    BW = _round_up(max(CL2, D, H, Opad), 128)
    bias = np.zeros((8, BW), np.float32)
    bias[0, :CL2] = np.repeat(b1, L2)               # conv1 bias (pooled layout)
    bias[1, :D] = np.repeat(b2, L4)                 # conv2 bias (pooled layout)
    bias[2, :H] = fc1_b
    bias[3, :O] = fc2_b

    return {
        'w1e': jnp.asarray(W1e, weights_dtype), 'w1o': jnp.asarray(W1o, weights_dtype),
        'w2e': jnp.asarray(W2e, weights_dtype), 'w2o': jnp.asarray(W2o, weights_dtype),
        'fw1': jnp.asarray(fw1, weights_dtype), 'fw2': jnp.asarray(fw2, weights_dtype),
        'bias': jnp.asarray(bias, jnp.float32),
        'input_size': L, 'out_features': O,
    }


# ---------------- kernel ----------------

def cnn1d_kernel(x_ref, w1e_ref, w1o_ref, w2e_ref, w2o_ref,
                 fw1_ref, fw2_ref, b_ref, out_ref):
    f32 = jnp.float32
    CL2 = w1e_ref.shape[1]            # C * L/2
    D = w2e_ref.shape[1]              # C * L/4 (flattened dim)
    H = fw1_ref.shape[1]              # 128
    Opad = fw2_ref.shape[1]           # padded output width

    bias = b_ref[...]                 # (8, BW) f32, static slices below
    b1 = bias[0:1, :CL2]
    b2 = bias[1:2, :D]
    fb1 = bias[2:3, :H]
    fb2 = bias[3:4, :Opad]

    cdt = w1e_ref.dtype               # MXU operand dtype (bf16 on v6e/v7x, else f32)
    x = x_ref[...].astype(cdt)        # (BB, L)

    # conv1 + bias + ReLU + stride-2 maxpool (pool folded into the band matrices)
    h1e = jnp.dot(x, w1e_ref[...], preferred_element_type=f32) + b1
    h1o = jnp.dot(x, w1o_ref[...], preferred_element_type=f32) + b1
    p1 = jnp.maximum(jnp.maximum(h1e, h1o), 0.0)                  # (BB, CL2) f32

    # conv2 + bias + ReLU + stride-2 maxpool
    p1c = p1.astype(cdt)
    h2e = jnp.dot(p1c, w2e_ref[...], preferred_element_type=f32) + b2
    h2o = jnp.dot(p1c, w2o_ref[...], preferred_element_type=f32) + b2
    p2 = jnp.maximum(jnp.maximum(h2e, h2o), 0.0)                  # (BB, D) f32

    # flatten (already channel-major) + fc1 + ReLU + fc2
    hid = jnp.maximum(
        jnp.dot(p2.astype(cdt), fw1_ref[...], preferred_element_type=f32) + fb1,
        0.0)                                                      # (BB, H)
    out_ref[...] = (jnp.dot(hid.astype(cdt), fw2_ref[...],
                            preferred_element_type=f32) + fb2)    # (BB, Opad)


# ---------------- wrapper ----------------

def _block_batch(B, block_b):
    Bp8 = _round_up(max(B, 1), 8)
    BB = max(8, min(_round_up(block_b, 8), Bp8))
    # Guarantee >= 2 grid steps when possible so the "parallel" batch axis can
    # shard across v7x's two TensorCores (harmless on single-TC v5e/v6e).
    if Bp8 >= 16 and Bp8 <= BB:
        BB = _round_up((Bp8 + 1) // 2, 8)
    Bp = _round_up(Bp8, BB)
    return BB, Bp


def cnn1d_apply(x, folded, *, block_b=1024):
    """x: (B, 1, L) float32 (PyTorch NCL).  Returns logits (B, output_size)."""
    B, cin, L = x.shape
    assert cin == 1 and L == folded['input_size'] and L % 4 == 0
    w1e, w1o = folded['w1e'], folded['w1o']
    w2e, w2o = folded['w2e'], folded['w2o']
    fw1, fw2, bias = folded['fw1'], folded['fw2'], folded['bias']
    O = folded['out_features']
    Opad = fw2.shape[1]

    BB, Bp = _block_batch(B, block_b)
    x2d = jnp.pad(x[:, 0, :].astype(jnp.float32), ((0, Bp - B), (0, 0)))

    def resident(a):  # whole array, constant block index -> stays in VMEM
        return pl.BlockSpec(a.shape, lambda i: (0, 0))

    weight_bytes = sum(int(np.prod(a.shape)) * a.dtype.itemsize
                       for a in (w1e, w1o, w2e, w2o, fw1, fw2, bias))
    io_bytes = 2 * 2 * BB * (L + Opad) * 4           # double-buffered x/out tiles
    vmem_limit = int(min(64 << 20,
                         max(32 << 20, 2 * weight_bytes + io_bytes + (8 << 20))))

    out = pl.pallas_call(
        cnn1d_kernel,
        out_shape=jax.ShapeDtypeStruct((Bp, Opad), jnp.float32),
        grid=(Bp // BB,),
        in_specs=[pl.BlockSpec((BB, L), lambda i: (i, 0)),
                  resident(w1e), resident(w1o),
                  resident(w2e), resident(w2o),
                  resident(fw1), resident(fw2), resident(bias)],
        out_specs=pl.BlockSpec((BB, Opad), lambda i: (i, 0)),
        compiler_params=pltpu.CompilerParams(
            dimension_semantics=("parallel",),
            vmem_limit_bytes=vmem_limit),
    )(x2d, w1e, w1o, w2e, w2o, fw1, fw2, bias)

    return out[:B, :O]


def cnn1d_forward(x, params, *, block_b=1024, weights_dtype=None):
    return cnn1d_apply(x, fold_params(params, weights_dtype=weights_dtype),
                       block_b=block_b)


# ---------------- pure-JAX reference (matches PyTorch semantics) ----------------

def reference_forward(x, params):
    w1, b1, w2, b2, fc1_w, fc1_b, fc2_w, fc2_b = params

    def conv1d_same(x, w, b):
        B, _, L = x.shape
        xp = jnp.pad(x, ((0, 0), (0, 0), (PAD, PAD)))
        out = jnp.zeros((B, w.shape[0], L), jnp.float32)
        for k in range(KSIZE):
            out = out + jnp.einsum('bil,oi->bol', xp[:, :, k:k + L], w[:, :, k])
        return out + b[None, :, None]

    def maxpool2(x):
        B, C, L = x.shape
        return jnp.max(x.reshape(B, C, L // 2, 2), axis=-1)

    h = maxpool2(jax.nn.relu(conv1d_same(x, w1, b1)))
    h = maxpool2(jax.nn.relu(conv1d_same(h, w2, b2)))
    f = h.reshape(x.shape[0], -1)
    h = jax.nn.relu(f @ fc1_w.T + fc1_b)
    return h @ fc2_w.T + fc2_b


if __name__ == "__main__":
    B, C, L, O = 2, 4, 16, 3            # batch, num_channels, input_size, output_size
    D = C * (L // 4)                    # flattened dim after two conv+pool stages

    key = jax.random.PRNGKey(0)
    ks = jax.random.split(key, 9)
    x = jax.random.normal(ks[0], (B, 1, L), jnp.float32)
    w1 = 0.1 * jax.random.normal(ks[1], (C, 1, KSIZE), jnp.float32)
    b1 = 0.1 * jax.random.normal(ks[2], (C,), jnp.float32)
    w2 = 0.1 * jax.random.normal(ks[3], (C, C, KSIZE), jnp.float32)
    b2 = 0.1 * jax.random.normal(ks[4], (C,), jnp.float32)
    fc1_w = 0.1 * jax.random.normal(ks[5], (HIDDEN, D), jnp.float32)
    fc1_b = 0.1 * jax.random.normal(ks[6], (HIDDEN,), jnp.float32)
    fc2_w = 0.1 * jax.random.normal(ks[7], (O, HIDDEN), jnp.float32)
    fc2_b = 0.1 * jax.random.normal(ks[8], (O,), jnp.float32)
    params = (w1, b1, w2, b2, fc1_w, fc1_b, fc2_w, fc2_b)

    folded = fold_params(params)        # host-side NumPy folding, done once
    out = jax.block_until_ready(cnn1d_apply(x, folded))
    ref = jax.block_until_ready(reference_forward(x, params))

    bf16_weights = folded['w1e'].dtype == jnp.bfloat16
    tol = 3e-2 if bf16_weights else 1e-4
    np.testing.assert_allclose(np.asarray(out), np.asarray(ref), rtol=tol, atol=tol)
    print("KERNEL_OK")
</pallas_src>

<mosaic_0001>
module attributes {stable_mosaic.version = 11 : i64} {
  func.func @cnn1d_kernel(%arg0: i32, %arg1: memref<8x16xf32, #tpu.memory_space<vmem>>, %arg2: memref<16x32xf32, #tpu.memory_space<vmem>>, %arg3: memref<16x32xf32, #tpu.memory_space<vmem>>, %arg4: memref<32x16xf32, #tpu.memory_space<vmem>>, %arg5: memref<32x16xf32, #tpu.memory_space<vmem>>, %arg6: memref<16x128xf32, #tpu.memory_space<vmem>>, %arg7: memref<128x128xf32, #tpu.memory_space<vmem>>, %arg8: memref<8x128xf32, #tpu.memory_space<vmem>>, %arg9: memref<8x128xf32, #tpu.memory_space<vmem>>) attributes {dimension_semantics = [#tpu.dimension_semantics<parallel>], iteration_bounds = array<i64: 1>, scalar_prefetch = 0 : i64, scratch_operands = 0 : i64, tpu.core_type = #tpu.core_type<tc>, window_params = [{transform_indices = @transform_0, window_bounds = array<i64: 8, 16>}, {pipeline_mode = #tpu.pipeline_mode<synchronous>, transform_indices = @transform_1, window_bounds = array<i64: 16, 32>}, {pipeline_mode = #tpu.pipeline_mode<synchronous>, transform_indices = @transform_2, window_bounds = array<i64: 16, 32>}, {pipeline_mode = #tpu.pipeline_mode<synchronous>, transform_indices = @transform_3, window_bounds = array<i64: 32, 16>}, {pipeline_mode = #tpu.pipeline_mode<synchronous>, transform_indices = @transform_4, window_bounds = array<i64: 32, 16>}, {pipeline_mode = #tpu.pipeline_mode<synchronous>, transform_indices = @transform_5, window_bounds = array<i64: 16, 128>}, {pipeline_mode = #tpu.pipeline_mode<synchronous>, transform_indices = @transform_6, window_bounds = array<i64: 128, 128>}, {pipeline_mode = #tpu.pipeline_mode<synchronous>, transform_indices = @transform_7, window_bounds = array<i64: 8, 128>}, {transform_indices = @transform_8, window_bounds = array<i64: 8, 128>}]} {
    %c0 = arith.constant 0 : index
    %c0_0 = arith.constant 0 : index
    %0 = vector.load %arg8[%c0, %c0_0] : memref<8x128xf32, #tpu.memory_space<vmem>>, vector<8x128xf32>
    %1 = vector.extract_strided_slice %0 {offsets = [0, 0], sizes = [1, 32], strides = [1, 1]} : vector<8x128xf32> to vector<1x32xf32>
    %2 = vector.extract_strided_slice %0 {offsets = [1, 0], sizes = [1, 16], strides = [1, 1]} : vector<8x128xf32> to vector<1x16xf32>
    %3 = vector.extract_strided_slice %0 {offsets = [2, 0], sizes = [1, 128], strides = [1, 1]} : vector<8x128xf32> to vector<1x128xf32>
    %4 = vector.extract_strided_slice %0 {offsets = [3, 0], sizes = [1, 128], strides = [1, 1]} : vector<8x128xf32> to vector<1x128xf32>
    %c0_1 = arith.constant 0 : index
    %c0_2 = arith.constant 0 : index
    %5 = vector.load %arg1[%c0_1, %c0_2] : memref<8x16xf32, #tpu.memory_space<vmem>>, vector<8x16xf32>
    %c0_3 = arith.constant 0 : index
    %c0_4 = arith.constant 0 : index
    %6 = vector.load %arg2[%c0_3, %c0_4] : memref<16x32xf32, #tpu.memory_space<vmem>>, vector<16x32xf32>
    %cst = arith.constant dense<0.000000e+00> : vector<8x32xf32>
    %7 = tpu.matmul %5, %6, %cst {dimension_numbers = #tpu.dot_dimension_numbers<[1], [0], [0], [1], [0, 0, 1, 1], [], []>} : vector<8x16xf32>, vector<16x32xf32>, vector<8x32xf32> -> vector<8x32xf32>
    %8 = vector.broadcast %1 : vector<1x32xf32> to vector<8x32xf32>
    %9 = arith.addf %7, %8 : vector<8x32xf32>
    %c0_5 = arith.constant 0 : index
    %c0_6 = arith.constant 0 : index
    %10 = vector.load %arg3[%c0_5, %c0_6] : memref<16x32xf32, #tpu.memory_space<vmem>>, vector<16x32xf32>
    %cst_7 = arith.constant dense<0.000000e+00> : vector<8x32xf32>
    %11 = tpu.matmul %5, %10, %cst_7 {dimension_numbers = #tpu.dot_dimension_numbers<[1], [0], [0], [1], [0, 0, 1, 1], [], []>} : vector<8x16xf32>, vector<16x32xf32>, vector<8x32xf32> -> vector<8x32xf32>
    %12 = vector.broadcast %1 : vector<1x32xf32> to vector<8x32xf32>
    %13 = arith.addf %11, %12 : vector<8x32xf32>
    %14 = arith.maximumf %9, %13 : vector<8x32xf32>
    %cst_8 = arith.constant 0.000000e+00 : f32
    %15 = vector.broadcast %cst_8 : f32 to vector<8x32xf32>
    %16 = arith.maximumf %14, %15 : vector<8x32xf32>
    %c0_9 = arith.constant 0 : index
    %c0_10 = arith.constant 0 : index
    %17 = vector.load %arg4[%c0_9, %c0_10] : memref<32x16xf32, #tpu.memory_space<vmem>>, vector<32x16xf32>
    %cst_11 = arith.constant dense<0.000000e+00> : vector<8x16xf32>
    %18 = tpu.matmul %16, %17, %cst_11 {dimension_numbers = #tpu.dot_dimension_numbers<[1], [0], [0], [1], [0, 0, 1, 1], [], []>} : vector<8x32xf32>, vector<32x16xf32>, vector<8x16xf32> -> vector<8x16xf32>
    %19 = vector.broadcast %2 : vector<1x16xf32> to vector<8x16xf32>
    %20 = arith.addf %18, %19 : vector<8x16xf32>
    %c0_12 = arith.constant 0 : index
    %c0_13 = arith.constant 0 : index
    %21 = vector.load %arg5[%c0_12, %c0_13] : memref<32x16xf32, #tpu.memory_space<vmem>>, vector<32x16xf32>
    %cst_14 = arith.constant dense<0.000000e+00> : vector<8x16xf32>
    %22 = tpu.matmul %16, %21, %cst_14 {dimension_numbers = #tpu.dot_dimension_numbers<[1], [0], [0], [1], [0, 0, 1, 1], [], []>} : vector<8x32xf32>, vector<32x16xf32>, vector<8x16xf32> -> vector<8x16xf32>
    %23 = vector.broadcast %2 : vector<1x16xf32> to vector<8x16xf32>
    %24 = arith.addf %22, %23 : vector<8x16xf32>
    %25 = arith.maximumf %20, %24 : vector<8x16xf32>
    %cst_15 = arith.constant 0.000000e+00 : f32
    %26 = vector.broadcast %cst_15 : f32 to vector<8x16xf32>
    %27 = arith.maximumf %25, %26 : vector<8x16xf32>
    %c0_16 = arith.constant 0 : index
    %c0_17 = arith.constant 0 : index
    %28 = vector.load %arg6[%c0_16, %c0_17] : memref<16x128xf32, #tpu.memory_space<vmem>>, vector<16x128xf32>
    %cst_18 = arith.constant dense<0.000000e+00> : vector<8x128xf32>
    %29 = tpu.matmul %27, %28, %cst_18 {dimension_numbers = #tpu.dot_dimension_numbers<[1], [0], [0], [1], [0, 0, 1, 1], [], []>} : vector<8x16xf32>, vector<16x128xf32>, vector<8x128xf32> -> vector<8x128xf32>
    %30 = vector.broadcast %3 : vector<1x128xf32> to vector<8x128xf32>
    %31 = arith.addf %29, %30 : vector<8x128xf32>
    %cst_19 = arith.constant 0.000000e+00 : f32
    %32 = vector.broadcast %cst_19 : f32 to vector<8x128xf32>
    %33 = arith.maximumf %31, %32 : vector<8x128xf32>
    %c0_20 = arith.constant 0 : index
    %c0_21 = arith.constant 0 : index
    %34 = vector.load %arg7[%c0_20, %c0_21] : memref<128x128xf32, #tpu.memory_space<vmem>>, vector<128x128xf32>
    %cst_22 = arith.constant dense<0.000000e+00> : vector<8x128xf32>
    %35 = tpu.matmul %33, %34, %cst_22 {dimension_numbers = #tpu.dot_dimension_numbers<[1], [0], [0], [1], [0, 0, 1, 1], [], []>} : vector<8x128xf32>, vector<128x128xf32>, vector<8x128xf32> -> vector<8x128xf32>
    %36 = vector.broadcast %4 : vector<1x128xf32> to vector<8x128xf32>
    %37 = arith.addf %35, %36 : vector<8x128xf32>
    %c0_23 = arith.constant 0 : index
    %c0_24 = arith.constant 0 : index
    %38 = vector.load %arg9[%c0_23, %c0_24] : memref<8x128xf32, #tpu.memory_space<vmem>>, vector<8x128xf32>
    tpu.vector_store %arg9[%c0_23, %c0_24], %37 {strides = array<i32>} : memref<8x128xf32, #tpu.memory_space<vmem>>, vector<8x128xf32>,
    return
  }
  func.func @transform_0(%arg0: i32) -> (i32, i32) {
    %c0_i32 = arith.constant 0 : i32
    %c0_i32_0 = arith.constant 0 : i32
    return %arg0, %c0_i32 : i32, i32
  }
  func.func @transform_1(%arg0: i32) -> (i32, i32) {
    %c0_i32 = arith.constant 0 : i32
    %c0_i32_0 = arith.constant 0 : i32
    %c0_i32_1 = arith.constant 0 : i32
    return %c0_i32, %c0_i32_0 : i32, i32
  }
  func.func @transform_2(%arg0: i32) -> (i32, i32) {
    %c0_i32 = arith.constant 0 : i32
    %c0_i32_0 = arith.constant 0 : i32
    %c0_i32_1 = arith.constant 0 : i32
    return %c0_i32, %c0_i32_0 : i32, i32
  }
  func.func @transform_3(%arg0: i32) -> (i32, i32) {
    %c0_i32 = arith.constant 0 : i32
    %c0_i32_0 = arith.constant 0 : i32
    %c0_i32_1 = arith.constant 0 : i32
    return %c0_i32, %c0_i32_0 : i32, i32
  }
  func.func @transform_4(%arg0: i32) -> (i32, i32) {
    %c0_i32 = arith.constant 0 : i32
    %c0_i32_0 = arith.constant 0 : i32
    %c0_i32_1 = arith.constant 0 : i32
    return %c0_i32, %c0_i32_0 : i32, i32
  }
  func.func @transform_5(%arg0: i32) -> (i32, i32) {
    %c0_i32 = arith.constant 0 : i32
    %c0_i32_0 = arith.constant 0 : i32
    %c0_i32_1 = arith.constant 0 : i32
    return %c0_i32, %c0_i32_0 : i32, i32
  }
  func.func @transform_6(%arg0: i32) -> (i32, i32) {
    %c0_i32 = arith.constant 0 : i32
    %c0_i32_0 = arith.constant 0 : i32
    %c0_i32_1 = arith.constant 0 : i32
    return %c0_i32, %c0_i32_0 : i32, i32
  }
  func.func @transform_7(%arg0: i32) -> (i32, i32) {
    %c0_i32 = arith.constant 0 : i32
    %c0_i32_0 = arith.constant 0 : i32
    %c0_i32_1 = arith.constant 0 : i32
    return %c0_i32, %c0_i32_0 : i32, i32
  }
  func.func @transform_8(%arg0: i32) -> (i32, i32) {
    %c0_i32 = arith.constant 0 : i32
    %c0_i32_0 = arith.constant 0 : i32
    return %arg0, %c0_i32 : i32, i32
  }
}

</mosaic_0001>

<llo_original>
// kernel: tpu_custom_call.1
$region0: #{tpu_custom_call.1}
  #allocation0 [shape = 'u32[]', space=smem, size = 0x4, offset = 0x4, fixed_abs, tag = 'smem constant byte address 0x4 - core index']
  #allocation1 [shape = 'u32[144,128]{1,0:T(1,128)}', space=vmem, size = 0x12000, scoped, tag = 'internal scratch']
  %s0 = inlined_call_operand.vmem [shape: f32[8,16], index: 0, kind: input, shape index: {}]
  %s1 = inlined_call_operand.vmem [shape: f32[16,32], index: 1, kind: input, shape index: {}]
  %s2 = inlined_call_operand.vmem [shape: f32[16,32], index: 2, kind: input, shape index: {}]
  %s3 = inlined_call_operand.vmem [shape: f32[32,16], index: 3, kind: input, shape index: {}]
  %s4 = inlined_call_operand.vmem [shape: f32[32,16], index: 4, kind: input, shape index: {}]
  %s5 = inlined_call_operand.vmem [shape: f32[16,128], index: 5, kind: input, shape index: {}]
  %s6 = inlined_call_operand.hbm [shape: f32[128,128], index: 6, kind: input, shape index: {}]
  %s7 = inlined_call_operand.vmem [shape: f32[8,128], index: 7, kind: input, shape index: {}]
  %s8 = inlined_call_operand.hbm [shape: f32[8,128], index: 8, kind: output, shape index: {}]
  %s9 = sld [smem:[#allocation0]]
  $region46: #{tpu_custom_call.1} parent=0
    _
  %s11 = ssub.s32 1, %s9
  %s12 = scalar_select 0, %s11, %s9
  $region1: #{tpu_custom_call.1} parent=0
    #allocation2 [shape = 'u8[65536]{0}', space=vmem, size = 0x10000, scoped, tag = 'input window, operand 6, single buffered']
    #allocation3 [shape = 's32[1]{0}', space=sflag, size = 0x4, scoped, tag = 'scoped memory for tpu_custom_call.1']
    #allocation4 [shape = 's32[1]{0}', space=sflag, size = 0x4, scoped, tag = 'scoped memory for tpu_custom_call.1']
    #allocation5 [shape = 'u8[4096]{0}', space=vmem, size = 0x1000, scoped, tag = 'output window, operand 0, single buffered']
    %13 = vsyncpa [#allocation3], 0
    %14 = vsyncpa [#allocation4], 0
    // Predicated region
    $region2: #{tpu_custom_call.1} parent=1 // pred_check
      _
    $region3: #{tpu_custom_call.1} parent=1 // pred_check_branch
      %16 = sbr.rel (0) target = $region5
    $region4: #{tpu_custom_call.1} parent=1 // pred_region
      _
    $region5: #{tpu_custom_call.1} parent=1 // pred_fallthru
      _
    // Predicated region
    $region6: #{tpu_custom_call.1} parent=1 // pred_check
      _
    $region7: #{tpu_custom_call.1} parent=1 // pred_check_branch
      %18 = sbr.rel (0) target = $region9
    $region8: #{tpu_custom_call.1} parent=1 // pred_region
      _
    $region9: #{tpu_custom_call.1} parent=1 // pred_fallthru
      _
    // Predicated region
    $region10: #{tpu_custom_call.1} parent=1 // pred_check
      _
    $region11: #{tpu_custom_call.1} parent=1 // pred_check_branch
      %20 = sbr.rel (0) target = $region13
    $region12: #{tpu_custom_call.1} parent=1 // pred_region
      _
    $region13: #{tpu_custom_call.1} parent=1 // pred_fallthru
      _
    // Predicated region
    $region14: #{tpu_custom_call.1} parent=1 // pred_check
      _
    $region15: #{tpu_custom_call.1} parent=1 // pred_check_branch
      %22 = sbr.rel (0) target = $region17
    $region16: #{tpu_custom_call.1} parent=1 // pred_region
      _
    $region17: #{tpu_custom_call.1} parent=1 // pred_fallthru
      _
    // Predicated region
    $region18: #{tpu_custom_call.1} parent=1 // pred_check
      _
    $region19: #{tpu_custom_call.1} parent=1 // pred_check_branch
      %24 = sbr.rel (0) target = $region21
    $region20: #{tpu_custom_call.1} parent=1 // pred_region
      _
    $region21: #{tpu_custom_call.1} parent=1 // pred_fallthru
      _
    // Predicated region
    $region22: #{tpu_custom_call.1} parent=1 // pred_check
      _
    $region23: #{tpu_custom_call.1} parent=1 // pred_check_branch
      %26 = sbr.rel (0) target = $region25
    $region24: #{tpu_custom_call.1} parent=1 // pred_region
      _
    $region25: #{tpu_custom_call.1} parent=1 // pred_fallthru
      _
    // Predicated region
    $region26: #{tpu_custom_call.1} parent=1 // pred_check
      _
    $region27: #{tpu_custom_call.1} parent=1 // pred_check_branch
      %28 = sbr.rel (0) target = $region29
    $region28: #{tpu_custom_call.1} parent=1 // pred_region
      %s30 = ssub.s32 2048, 2048
      %31 = vsyncadd [#allocation3], %s30
      %s32 = sshll.u32 [#allocation2], 4
      %s33 = int_to_ptr.vmem [resolvable:$true] %s32
      %38 = dma.hbm_to_vmem [thread:$0]  %s6, 2048, %s33, [#allocation3], 128, 128, 8
    $region29: #{tpu_custom_call.1} parent=1 // pred_fallthru
      _
    // Predicated region
    $region30: #{tpu_custom_call.1} parent=1 // pred_check
      _
    $region31: #{tpu_custom_call.1} parent=1 // pred_check_branch
      %40 = sbr.rel (0) target = $region33
    $region32: #{tpu_custom_call.1} parent=1 // pred_region
      _
    $region33: #{tpu_custom_call.1} parent=1 // pred_fallthru
      _
    // Predicated region
    $region34: #{tpu_custom_call.1} parent=1 // pred_check
      _
    $region35: #{tpu_custom_call.1} parent=1 // pred_check_branch
      %42 = sbr.rel (0) target = $region37
    $region36: #{tpu_custom_call.1} parent=1 // pred_region
      %43 = dma.done [#allocation3], 2048
    $region37: #{tpu_custom_call.1} parent=1 // pred_fallthru
      _
    %v44 = vld [vmem:[%s7] sm:$0xff]
    %v45 = vld [vmem:[%s0] sm:$0xff]
    %v46 = vld [vmem:[%s1] sm:$0xff]
    %v47 = vld [vmem:[%s1 + $0x8] sm:$0xff]
    %v48 = vlaneseq
    %v49 = vshrl.u32 %v48, 7
    %v50 = vsub.s32 0, %v49
    %v51 = vrot.slane %v44, %v50
    %vm52 = vcmask 130048
    %v54 = vsel %vm52, %v45, 0
    %56 = vmatprep.subr.mxu0 0.0
    %57 = vmatpush1.msra.mxu0 %v46
    %58 = vmatprep.subr.mxu0 0.0
    %59 = vmatpush1.msra.mxu0 %v47
    %60 = vmatprep.subr.mxu0 0.0
    %61 = vmatpush1.msra.mxu0 0.0
    %62 = vmatprep.subr.mxu0 0.0
    %63 = vmatpush1.msra.mxu0 0.0
    %64 = vmatprep.subr.mxu0 0.0
    %65 = vmatpush1.msra.mxu0 0.0
    %66 = vmatprep.subr.mxu0 0.0
    %67 = vmatpush1.msra.mxu0 0.0
    %68 = vmatprep.subr.mxu0 0.0
    %69 = vmatpush1.msra.mxu0 0.0
    %70 = vmatprep.subr.mxu0 0.0
    %71 = vmatpush1.msra.mxu0 0.0
    %72 = vmatprep.subr.mxu0 0.0
    %73 = vmatpush1.msra.mxu0 0.0
    %74 = vmatprep.subr.mxu0 0.0
    %75 = vmatpush1.msra.mxu0 0.0
    %76 = vmatprep.subr.mxu0 0.0
    %77 = vmatpush1.msra.mxu0 0.0
    %78 = vmatprep.subr.mxu0 0.0
    %79 = vmatpush1.msra.mxu0 0.0
    %80 = vmatprep.subr.mxu0 0.0
    %81 = vmatpush1.msra.mxu0 0.0
    %82 = vmatprep.subr.mxu0 0.0
    %83 = vmatpush1.msra.mxu0 0.0
    %84 = vmatprep.subr.mxu0 0.0
    %85 = vmatpush1.msra.mxu0 0.0
    %86 = vmatprep.subr.mxu0 0.0
    %87 = vmatpush1.msra.mxu0 0.0
    %88 = vmatprep.subr.mxu0 0.0
    %89 = vmatpush1.msra.mxu0 0.0
    %90 = vmatprep.subr.mxu0 0.0
    %91 = vmatpush1.msra.mxu0 0.0
    %92 = vmatprep.subr.mxu0 0.0
    %93 = vmatpush1.msra.mxu0 0.0
    %94 = vmatprep.subr.mxu0 0.0
    %95 = vmatpush1.msra.mxu0 0.0
    %96 = vmatprep.subr.mxu0 0.0
    %97 = vmatpush1.msra.mxu0 0.0
    %98 = vmatprep.subr.mxu0 0.0
    %99 = vmatpush1.msra.mxu0 0.0
    %100 = vmatprep.subr.mxu0 0.0
    %101 = vmatpush1.msra.mxu0 0.0
    %102 = vmatprep.subr.mxu0 0.0
    %103 = vmatpush1.msra.mxu0 0.0
    %104 = vmatprep.subr.mxu0 0.0
    %105 = vmatpush1.msra.mxu0 0.0
    %106 = vmatprep.subr.mxu0 0.0
    %107 = vmatpush1.msra.mxu0 0.0
    %108 = vmatprep.subr.mxu0 0.0
    %109 = vmatpush1.msra.mxu0 0.0
    %110 = vmatprep.subr.mxu0 0.0
    %111 = vmatpush1.msra.mxu0 0.0
    %112 = vmatprep.subr.mxu0 0.0
    %113 = vmatpush1.msra.mxu0 0.0
    %114 = vmatprep.subr.mxu0 0.0
    %115 = vmatpush1.msra.mxu0 0.0
    %116 = vmatprep.subr.mxu0 0.0
    %117 = vmatpush1.msra.mxu0 0.0
    %118 = vmatprep.subr.mxu0 0.0
    %119 = vmatpush1.msra.mxu0 0.0
    %120 = vmatprep.mubr.f32.mxu0 0.0
    %121 = vmatmul.mubr.f32.gmra.mrb[0].mxu0 %v54
    %v122 = vpop.f32.mrb[0].mxu0
    %v123 = vadd.f32 %v51, %v122
    %v124 = vpop.f32.mrb[0].mxu0
    %125 = vdwg.mxu0
    %v126 = vld [vmem:[%s2] sm:$0xff]
    %v127 = vld [vmem:[%s2 + $0x8] sm:$0xff]
    %128 = vmatprep.subr.mxu0 0.0
    %129 = vmatpush1.msra.mxu0 %v126
    %130 = vmatprep.subr.mxu0 0.0
    %131 = vmatpush1.msra.mxu0 %v127
    %132 = vmatprep.subr.mxu0 0.0
    %133 = vmatpush1.msra.mxu0 0.0
    %134 = vmatprep.subr.mxu0 0.0
    %135 = vmatpush1.msra.mxu0 0.0
    %136 = vmatprep.subr.mxu0 0.0
    %137 = vmatpush1.msra.mxu0 0.0
    %138 = vmatprep.subr.mxu0 0.0
    %139 = vmatpush1.msra.mxu0 0.0
    %140 = vmatprep.subr.mxu0 0.0
    %141 = vmatpush1.msra.mxu0 0.0
    %142 = vmatprep.subr.mxu0 0.0
    %143 = vmatpush1.msra.mxu0 0.0
    %144 = vmatprep.subr.mxu0 0.0
    %145 = vmatpush1.msra.mxu0 0.0
    %146 = vmatprep.subr.mxu0 0.0
    %147 = vmatpush1.msra.mxu0 0.0
    %148 = vmatprep.subr.mxu0 0.0
    %149 = vmatpush1.msra.mxu0 0.0
    %150 = vmatprep.subr.mxu0 0.0
    %151 = vmatpush1.msra.mxu0 0.0
    %152 = vmatprep.subr.mxu0 0.0
    %153 = vmatpush1.msra.mxu0 0.0
    %154 = vmatprep.subr.mxu0 0.0
    %155 = vmatpush1.msra.mxu0 0.0
    %156 = vmatprep.subr.mxu0 0.0
    %157 = vmatpush1.msra.mxu0 0.0
    %158 = vmatprep.subr.mxu0 0.0
    %159 = vmatpush1.msra.mxu0 0.0
    %160 = vmatprep.subr.mxu0 0.0
    %161 = vmatpush1.msra.mxu0 0.0
    %162 = vmatprep.subr.mxu0 0.0
    %163 = vmatpush1.msra.mxu0 0.0
    %164 = vmatprep.subr.mxu0 0.0
    %165 = vmatpush1.msra.mxu0 0.0
    %166 = vmatprep.subr.mxu0 0.0
    %167 = vmatpush1.msra.mxu0 0.0
    %168 = vmatprep.subr.mxu0 0.0
    %169 = vmatpush1.msra.mxu0 0.0
    %170 = vmatprep.subr.mxu0 0.0
    %171 = vmatpush1.msra.mxu0 0.0
    %172 = vmatprep.subr.mxu0 0.0
    %173 = vmatpush1.msra.mxu0 0.0
    %174 = vmatprep.subr.mxu0 0.0
    %175 = vmatpush1.msra.mxu0 0.0
    %176 = vmatprep.subr.mxu0 0.0
    %177 = vmatpush1.msra.mxu0 0.0
    %178 = vmatprep.subr.mxu0 0.0
    %179 = vmatpush1.msra.mxu0 0.0
    %180 = vmatprep.subr.mxu0 0.0
    %181 = vmatpush1.msra.mxu0 0.0
    %182 = vmatprep.subr.mxu0 0.0
    %183 = vmatpush1.msra.mxu0 0.0
    %184 = vmatprep.subr.mxu0 0.0
    %185 = vmatpush1.msra.mxu0 0.0
    %186 = vmatprep.subr.mxu0 0.0
    %187 = vmatpush1.msra.mxu0 0.0
    %188 = vmatprep.subr.mxu0 0.0
    %189 = vmatpush1.msra.mxu0 0.0
    %190 = vmatprep.subr.mxu0 0.0
    %191 = vmatpush1.msra.mxu0 0.0
    %192 = vmatprep.mubr.f32.mxu0 0.0
    %193 = vmatmul.mubr.f32.gmra.mrb[0].mxu0 %v54
    %v194 = vpop.f32.mrb[0].mxu0
    %v195 = vadd.f32 %v51, %v194
    %v196 = vpop.f32.mrb[0].mxu0
    %197 = vdwg.mxu0
    %v198 = vmax.f32 %v123, %v195
    %v199 = vmax.f32 %v198, 0.0
    %v200 = vld [vmem:[%s3] sm:$0xff]
    %v201 = vld [vmem:[%s3 + $0x8] sm:$0xff]
    %v202 = vld [vmem:[%s3 + $0x10] sm:$0xff]
    %v203 = vld [vmem:[%s3 + $0x18] sm:$0xff]
    %v204 = vlaneseq
    %v205 = vshrl.u32 %v204, 7
    %v206 = vsub.s32 1, %v205
    %v207 = vrot.slane %v44, %v206
    %vm208 = vcmask 261120
    %v210 = vsel %vm208, %v199, 0
    %212 = vmatprep.subr.mxu0 0.0
    %213 = vmatpush1.msra.mxu0 %v200
    %214 = vmatprep.subr.mxu0 0.0
    %215 = vmatpush1.msra.mxu0 %v201
    %216 = vmatprep.subr.mxu0 0.0
    %217 = vmatpush1.msra.mxu0 %v202
    %218 = vmatprep.subr.mxu0 0.0
    %219 = vmatpush1.msra.mxu0 %v203
    %220 = vmatprep.subr.mxu0 0.0
    %221 = vmatpush1.msra.mxu0 0.0
    %222 = vmatprep.subr.mxu0 0.0
    %223 = vmatpush1.msra.mxu0 0.0
    %224 = vmatprep.subr.mxu0 0.0
    %225 = vmatpush1.msra.mxu0 0.0
    %226 = vmatprep.subr.mxu0 0.0
    %227 = vmatpush1.msra.mxu0 0.0
    %228 = vmatprep.subr.mxu0 0.0
    %229 = vmatpush1.msra.mxu0 0.0
    %230 = vmatprep.subr.mxu0 0.0
    %231 = vmatpush1.msra.mxu0 0.0
    %232 = vmatprep.subr.mxu0 0.0
    %233 = vmatpush1.msra.mxu0 0.0
    %234 = vmatprep.subr.mxu0 0.0
    %235 = vmatpush1.msra.mxu0 0.0
    %236 = vmatprep.subr.mxu0 0.0
    %237 = vmatpush1.msra.mxu0 0.0
    %238 = vmatprep.subr.mxu0 0.0
    %239 = vmatpush1.msra.mxu0 0.0
    %240 = vmatprep.subr.mxu0 0.0
    %241 = vmatpush1.msra.mxu0 0.0
    %242 = vmatprep.subr.mxu0 0.0
    %243 = vmatpush1.msra.mxu0 0.0
    %244 = vmatprep.subr.mxu0 0.0
    %245 = vmatpush1.msra.mxu0 0.0
    %246 = vmatprep.subr.mxu0 0.0
    %247 = vmatpush1.msra.mxu0 0.0
    %248 = vmatprep.subr.mxu0 0.0
    %249 = vmatpush1.msra.mxu0 0.0
    %250 = vmatprep.subr.mxu0 0.0
    %251 = vmatpush1.msra.mxu0 0.0
    %252 = vmatprep.subr.mxu0 0.0
    %253 = vmatpush1.msra.mxu0 0.0
    %254 = vmatprep.subr.mxu0 0.0
    %255 = vmatpush1.msra.mxu0 0.0
    %256 = vmatprep.subr.mxu0 0.0
    %257 = vmatpush1.msra.mxu0 0.0
    %258 = vmatprep.subr.mxu0 0.0
    %259 = vmatpush1.msra.mxu0 0.0
    %260 = vmatprep.subr.mxu0 0.0
    %261 = vmatpush1.msra.mxu0 0.0
    %262 = vmatprep.subr.mxu0 0.0
    %263 = vmatpush1.msra.mxu0 0.0
    %264 = vmatprep.subr.mxu0 0.0
    %265 = vmatpush1.msra.mxu0 0.0
    %266 = vmatprep.subr.mxu0 0.0
    %267 = vmatpush1.msra.mxu0 0.0
    %268 = vmatprep.subr.mxu0 0.0
    %269 = vmatpush1.msra.mxu0 0.0
    %270 = vmatprep.subr.mxu0 0.0
    %271 = vmatpush1.msra.mxu0 0.0
    %272 = vmatprep.subr.mxu0 0.0
    %273 = vmatpush1.msra.mxu0 0.0
    %274 = vmatprep.subr.mxu0 0.0
    %275 = vmatpush1.msra.mxu0 0.0
    %276 = vmatprep.mubr.f32.mxu0 0.0
    %277 = vmatmul.mubr.f32.gmra.mrb[0].mxu0 %v210
    %v278 = vpop.f32.mrb[0].mxu0
    %v279 = vadd.f32 %v207, %v278
    %v280 = vpop.f32.mrb[0].mxu0
    %281 = vdwg.mxu0
    %v282 = vld [vmem:[%s4] sm:$0xff]
    %v283 = vld [vmem:[%s4 + $0x8] sm:$0xff]
    %v284 = vld [vmem:[%s4 + $0x10] sm:$0xff]
    %v285 = vld [vmem:[%s4 + $0x18] sm:$0xff]
    %286 = vmatprep.subr.mxu0 0.0
    %287 = vmatpush1.msra.mxu0 %v282
    %288 = vmatprep.subr.mxu0 0.0
    %289 = vmatpush1.msra.mxu0 %v283
    %290 = vmatprep.subr.mxu0 0.0
    %291 = vmatpush1.msra.mxu0 %v284
    %292 = vmatprep.subr.mxu0 0.0
    %293 = vmatpush1.msra.mxu0 %v285
    %294 = vmatprep.subr.mxu0 0.0
    %295 = vmatpush1.msra.mxu0 0.0
    %296 = vmatprep.subr.mxu0 0.0
    %297 = vmatpush1.msra.mxu0 0.0
    %298 = vmatprep.subr.mxu0 0.0
    %299 = vmatpush1.msra.mxu0 0.0
    %300 = vmatprep.subr.mxu0 0.0
    %301 = vmatpush1.msra.mxu0 0.0
    %302 = vmatprep.subr.mxu0 0.0
    %303 = vmatpush1.msra.mxu0 0.0
    %304 = vmatprep.subr.mxu0 0.0
    %305 = vmatpush1.msra.mxu0 0.0
    %306 = vmatprep.subr.mxu0 0.0
    %307 = vmatpush1.msra.mxu0 0.0
    %308 = vmatprep.subr.mxu0 0.0
    %309 = vmatpush1.msra.mxu0 0.0
    %310 = vmatprep.subr.mxu0 0.0
    %311 = vmatpush1.msra.mxu0 0.0
    %312 = vmatprep.subr.mxu0 0.0
    %313 = vmatpush1.msra.mxu0 0.0
    %314 = vmatprep.subr.mxu0 0.0
    %315 = vmatpush1.msra.mxu0 0.0
    %316 = vmatprep.subr.mxu0 0.0
    %317 = vmatpush1.msra.mxu0 0.0
    %318 = vmatprep.subr.mxu0 0.0
    %319 = vmatpush1.msra.mxu0 0.0
    %320 = vmatprep.subr.mxu0 0.0
    %321 = vmatpush1.msra.mxu0 0.0
    %322 = vmatprep.subr.mxu0 0.0
    %323 = vmatpush1.msra.mxu0 0.0
    %324 = vmatprep.subr.mxu0 0.0
    %325 = vmatpush1.msra.mxu0 0.0
    %326 = vmatprep.subr.mxu0 0.0
    %327 = vmatpush1.msra.mxu0 0.0
    %328 = vmatprep.subr.mxu0 0.0
    %329 = vmatpush1.msra.mxu0 0.0
    %330 = vmatprep.subr.mxu0 0.0
    %331 = vmatpush1.msra.mxu0 0.0
    %332 = vmatprep.subr.mxu0 0.0
    %333 = vmatpush1.msra.mxu0 0.0
    %334 = vmatprep.subr.mxu0 0.0
    %335 = vmatpush1.msra.mxu0 0.0
    %336 = vmatprep.subr.mxu0 0.0
    %337 = vmatpush1.msra.mxu0 0.0
    %338 = vmatprep.subr.mxu0 0.0
    %339 = vmatpush1.msra.mxu0 0.0
    %340 = vmatprep.subr.mxu0 0.0
    %341 = vmatpush1.msra.mxu0 0.0
    %342 = vmatprep.subr.mxu0 0.0
    %343 = vmatpush1.msra.mxu0 0.0
    %344 = vmatprep.subr.mxu0 0.0
    %345 = vmatpush1.msra.mxu0 0.0
    %346 = vmatprep.subr.mxu0 0.0
    %347 = vmatpush1.msra.mxu0 0.0
    %348 = vmatprep.subr.mxu0 0.0
    %349 = vmatpush1.msra.mxu0 0.0
    %350 = vmatprep.mubr.f32.mxu0 0.0
    %351 = vmatmul.mubr.f32.gmra.mrb[0].mxu0 %v210
    %v352 = vpop.f32.mrb[0].mxu0
    %v353 = vadd.f32 %v207, %v352
    %v354 = vpop.f32.mrb[0].mxu0
    %355 = vdwg.mxu0
    %v356 = vmax.f32 %v279, %v353
    %v357 = vmax.f32 %v356, 0.0
    %v358 = vld [vmem:[%s5] sm:$0xff]
    %v359 = vld [vmem:[%s5 + $0x8] sm:$0xff]
    %v360 = vlaneseq
    %v361 = vshrl.u32 %v360, 7
    %v362 = vsub.s32 2, %v361
    %v363 = vrot.slane %v44, %v362
    %v365 = vsel %vm52, %v357, 0
    %367 = vmatprep.subr.mxu0 0.0
    %368 = vmatpush1.msra.mxu0 %v358
    %369 = vmatprep.subr.mxu0 0.0
    %370 = vmatpush1.msra.mxu0 %v359
    %371 = vmatprep.subr.mxu0 0.0
    %372 = vmatpush1.msra.mxu0 0.0
    %373 = vmatprep.subr.mxu0 0.0
    %374 = vmatpush1.msra.mxu0 0.0
    %375 = vmatprep.subr.mxu0 0.0
    %376 = vmatpush1.msra.mxu0 0.0
    %377 = vmatprep.subr.mxu0 0.0
    %378 = vmatpush1.msra.mxu0 0.0
    %379 = vmatprep.subr.mxu0 0.0
    %380 = vmatpush1.msra.mxu0 0.0
    %381 = vmatprep.subr.mxu0 0.0
    %382 = vmatpush1.msra.mxu0 0.0
    %383 = vmatprep.subr.mxu0 0.0
    %384 = vmatpush1.msra.mxu0 0.0
    %385 = vmatprep.subr.mxu0 0.0
    %386 = vmatpush1.msra.mxu0 0.0
    %387 = vmatprep.subr.mxu0 0.0
    %388 = vmatpush1.msra.mxu0 0.0
    %389 = vmatprep.subr.mxu0 0.0
    %390 = vmatpush1.msra.mxu0 0.0
    %391 = vmatprep.subr.mxu0 0.0
    %392 = vmatpush1.msra.mxu0 0.0
    %393 = vmatprep.subr.mxu0 0.0
    %394 = vmatpush1.msra.mxu0 0.0
    %395 = vmatprep.subr.mxu0 0.0
    %396 = vmatpush1.msra.mxu0 0.0
    %397 = vmatprep.subr.mxu0 0.0
    %398 = vmatpush1.msra.mxu0 0.0
    %399 = vmatprep.subr.mxu0 0.0
    %400 = vmatpush1.msra.mxu0 0.0
    %401 = vmatprep.subr.mxu0 0.0
    %402 = vmatpush1.msra.mxu0 0.0
    %403 = vmatprep.subr.mxu0 0.0
    %404 = vmatpush1.msra.mxu0 0.0
    %405 = vmatprep.subr.mxu0 0.0
    %406 = vmatpush1.msra.mxu0 0.0
    %407 = vmatprep.subr.mxu0 0.0
    %408 = vmatpush1.msra.mxu0 0.0
    %409 = vmatprep.subr.mxu0 0.0
    %410 = vmatpush1.msra.mxu0 0.0
    %411 = vmatprep.subr.mxu0 0.0
    %412 = vmatpush1.msra.mxu0 0.0
    %413 = vmatprep.subr.mxu0 0.0
    %414 = vmatpush1.msra.mxu0 0.0
    %415 = vmatprep.subr.mxu0 0.0
    %416 = vmatpush1.msra.mxu0 0.0
    %417 = vmatprep.subr.mxu0 0.0
    %418 = vmatpush1.msra.mxu0 0.0
    %419 = vmatprep.subr.mxu0 0.0
    %420 = vmatpush1.msra.mxu0 0.0
    %421 = vmatprep.subr.mxu0 0.0
    %422 = vmatpush1.msra.mxu0 0.0
    %423 = vmatprep.subr.mxu0 0.0
    %424 = vmatpush1.msra.mxu0 0.0
    %425 = vmatprep.subr.mxu0 0.0
    %426 = vmatpush1.msra.mxu0 0.0
    %427 = vmatprep.subr.mxu0 0.0
    %428 = vmatpush1.msra.mxu0 0.0
    %429 = vmatprep.subr.mxu0 0.0
    %430 = vmatpush1.msra.mxu0 0.0
    %431 = vmatprep.mubr.f32.mxu0 0.0
    %432 = vmatmul.mubr.f32.gmra.mrb[0].mxu0 %v365
    %v433 = vpop.f32.mrb[0].mxu0
    %v434 = vadd.f32 %v363, %v433
    %v435 = vpop.f32.mrb[0].mxu0
    %436 = vdwg.mxu0
    %v437 = vmax.f32 %v434, 0.0
    %v438 = vld [vmem:[#allocation2] sm:$0xff]
    %v439 = vld [vmem:[#allocation2 + $0x8] sm:$0xff]
    %v440 = vld [vmem:[#allocation2 + $0x10] sm:$0xff]
    %v441 = vld [vmem:[#allocation2 + $0x18] sm:$0xff]
    %v442 = vld [vmem:[#allocation2 + $0x20] sm:$0xff]
    %v443 = vld [vmem:[#allocation2 + $0x28] sm:$0xff]
    %v444 = vld [vmem:[#allocation2 + $0x30] sm:$0xff]
    %v445 = vld [vmem:[#allocation2 + $0x38] sm:$0xff]
    %v446 = vld [vmem:[#allocation2 + $0x40] sm:$0xff]
    %v447 = vld [vmem:[#allocation2 + $0x48] sm:$0xff]
    %v448 = vld [vmem:[#allocation2 + $0x50] sm:$0xff]
    %v449 = vld [vmem:[#allocation2 + $0x58] sm:$0xff]
    %v450 = vld [vmem:[#allocation2 + $0x60] sm:$0xff]
    %v451 = vld [vmem:[#allocation2 + $0x68] sm:$0xff]
    %v452 = vld [vmem:[#allocation2 + $0x70] sm:$0xff]
    %v453 = vld [vmem:[#allocation2 + $0x78] sm:$0xff]
    %v454 = vlaneseq
    %v455 = vshrl.u32 %v454, 7
    %v456 = vsub.s32 3, %v455
    %v457 = vrot.slane %v44, %v456
    %458 = vmatprep.subr.mxu0 0.0
    %459 = vmatpush1.msra.mxu0 %v438
    %460 = vmatprep.subr.mxu0 0.0
    %461 = vmatpush1.msra.mxu0 %v439
    %462 = vmatprep.subr.mxu0 0.0
    %463 = vmatpush1.msra.mxu0 %v440
    %464 = vmatprep.subr.mxu0 0.0
    %465 = vmatpush1.msra.mxu0 %v441
    %466 = vmatprep.subr.mxu0 0.0
    %467 = vmatpush1.msra.mxu0 %v442
    %468 = vmatprep.subr.mxu0 0.0
    %469 = vmatpush1.msra.mxu0 %v443
    %470 = vmatprep.subr.mxu0 0.0
    %471 = vmatpush1.msra.mxu0 %v444
    %472 = vmatprep.subr.mxu0 0.0
    %473 = vmatpush1.msra.mxu0 %v445
    %474 = vmatprep.subr.mxu0 0.0
    %475 = vmatpush1.msra.mxu0 %v446
    %476 = vmatprep.subr.mxu0 0.0
    %477 = vmatpush1.msra.mxu0 %v447
    %478 = vmatprep.subr.mxu0 0.0
    %479 = vmatpush1.msra.mxu0 %v448
    %480 = vmatprep.subr.mxu0 0.0
    %481 = vmatpush1.msra.mxu0 %v449
    %482 = vmatprep.subr.mxu0 0.0
    %483 = vmatpush1.msra.mxu0 %v450
    %484 = vmatprep.subr.mxu0 0.0
    %485 = vmatpush1.msra.mxu0 %v451
    %486 = vmatprep.subr.mxu0 0.0
    %487 = vmatpush1.msra.mxu0 %v452
    %488 = vmatprep.subr.mxu0 0.0
    %489 = vmatpush1.msra.mxu0 %v453
    %490 = vmatprep.subr.mxu0 0.0
    %491 = vmatpush1.msra.mxu0 0.0
    %492 = vmatprep.subr.mxu0 0.0
    %493 = vmatpush1.msra.mxu0 0.0
    %494 = vmatprep.subr.mxu0 0.0
    %495 = vmatpush1.msra.mxu0 0.0
    %496 = vmatprep.subr.mxu0 0.0
    %497 = vmatpush1.msra.mxu0 0.0
    %498 = vmatprep.subr.mxu0 0.0
    %499 = vmatpush1.msra.mxu0 0.0
    %500 = vmatprep.subr.mxu0 0.0
    %501 = vmatpush1.msra.mxu0 0.0
    %502 = vmatprep.subr.mxu0 0.0
    %503 = vmatpush1.msra.mxu0 0.0
    %504 = vmatprep.subr.mxu0 0.0
    %505 = vmatpush1.msra.mxu0 0.0
    %506 = vmatprep.subr.mxu0 0.0
    %507 = vmatpush1.msra.mxu0 0.0
    %508 = vmatprep.subr.mxu0 0.0
    %509 = vmatpush1.msra.mxu0 0.0
    %510 = vmatprep.subr.mxu0 0.0
    %511 = vmatpush1.msra.mxu0 0.0
    %512 = vmatprep.subr.mxu0 0.0
    %513 = vmatpush1.msra.mxu0 0.0
    %514 = vmatprep.subr.mxu0 0.0
    %515 = vmatpush1.msra.mxu0 0.0
    %516 = vmatprep.subr.mxu0 0.0
    %517 = vmatpush1.msra.mxu0 0.0
    %518 = vmatprep.subr.mxu0 0.0
    %519 = vmatpush1.msra.mxu0 0.0
    %520 = vmatprep.subr.mxu0 0.0
    %521 = vmatpush1.msra.mxu0 0.0
    %522 = vmatprep.mubr.f32.mxu0 0.0
    %523 = vmatmul.mubr.f32.gmra.mrb[0].mxu0 %v437
    %v524 = vpop.f32.mrb[0].mxu0
    %v525 = vadd.f32 %v457, %v524
    %v526 = vpop.f32.mrb[0].mxu0
    %527 = vdwg.mxu0
    %528 = vst [vmem:[#allocation5] sm:$0xff] %v525
    // Predicated region
    $region38: #{tpu_custom_call.1} parent=1 // pred_check
      _
    $region39: #{tpu_custom_call.1} parent=1 // pred_check_branch
      %530 = sbr.rel (0) target = $region41
    $region40: #{tpu_custom_call.1} parent=1 // pred_region
      %s532 = ssub.s32 128, 128
      %533 = vsyncadd [#allocation4], %s532
      %s535 = sshll.u32 [#allocation5], 4
      %s536 = int_to_ptr.vmem [resolvable:$true] %s535
      %538 = dma.vmem_to_hbm [thread:$0]  %s536, 128, %s8, [#allocation4]
    $region41: #{tpu_custom_call.1} parent=1 // pred_fallthru
      _
    // Predicated region
    $region42: #{tpu_custom_call.1} parent=1 // pred_check
      _
    $region43: #{tpu_custom_call.1} parent=1 // pred_check_branch
      %540 = sbr.rel (0) target = $region45
    $region44: #{tpu_custom_call.1} parent=1 // pred_region
      %541 = dma.done [#allocation4], 128
    $region45: #{tpu_custom_call.1} parent=1 // pred_fallthru
      _
    %542 = vsyncpa [#allocation3], 1
    %543 = vsyncpa [#allocation4], 1

</llo_original>
